<compile_context>
chip_gen: v6e
topology: v6e:2x2x1
jax: 0.10.0
libtpu: 0.0.40
codegen_flags: <defaults>
</compile_context>

<pallas_src>
import functools

import jax
import jax.numpy as jnp
from jax.experimental import pallas as pl
from jax.experimental.pallas import tpu as pltpu

LANES = 128
ACC_ROWS = 8            # accumulator sublane extent (one f32 vreg tall)
NUM_CORE_SPLITS = 2     # leading 'parallel' axis: 2x on v7x, no-op on v5e/v6e


def _default_tile_rows():
    """Generation-dependent row-block size (HBM-bandwidth-bound kernel)."""
    try:
        kind = jax.devices()[0].device_kind.lower()
    except Exception:  # defensive: unknown backend
        kind = ""
    if "v7" in kind or "v6" in kind:
        return 8192     # 4 MiB f32 / input block; amortizes ~0.35us step cost
    if "v5" in kind:
        return 4096     # 2 MiB f32 / input block; plenty at ~0.82-1.2 TB/s
    return 4096         # conservative default (v4 / unknown)


def _rmse_kernel(p_ref, l_ref, o_ref, acc_ref, *, blocks_per_split, tile_rows,
                 total_rows, first_masked_block, mask_needed):
    i = pl.program_id(1)   # inner (reduction) axis, sequential per core

    @pl.when(i == 0)
    def _init():
        acc_ref[...] = jnp.zeros_like(acc_ref)

    # Upcast after DMA (free relative to the memory bound).
    diff = p_ref[...].astype(jnp.float32) - l_ref[...].astype(jnp.float32)
    sq = diff * diff
    sq = jnp.where(jnp.isnan(sq), 0.0, sq)

    def _accumulate(vals):
        if acc_ref.shape == vals.shape:
            acc_ref[...] += vals
        else:
            # Tile-aligned reshape (tile_rows,128)->(tile_rows/8,8,128); the
            # axis-0 sum is pure element-wise vreg adds (no XLU), and the
            # accumulator stays one vreg tall.
            acc_ref[...] += vals.reshape(
                -1, acc_ref.shape[0], acc_ref.shape[1]).sum(axis=0)

    if mask_needed:
        glob = pl.program_id(0) * blocks_per_split + i  # logical block index

        @pl.when(glob >= first_masked_block)
        def _masked():
            # Partial / duplicated (clamped) blocks: zero rows beyond the real
            # extent.  NaN-zeroing above already ran, so block-padding garbage
            # (even NaN/Inf) cannot leak into the sum.
            row_ids = (jax.lax.broadcasted_iota(jnp.int32, sq.shape, 0)
                       + glob * tile_rows)
            _accumulate(jnp.where(row_ids < total_rows, sq, 0.0))

        @pl.when(glob < first_masked_block)
        def _plain():
            _accumulate(sq)
    else:
        _accumulate(sq)

    @pl.when(i == pl.num_programs(1) - 1)
    def _finalize():
        o_ref[0] = acc_ref[...]   # per-core partial sums; reduced in wrapper


def rmse_pallas(preds, labels, *, tile_rows=None, num_splits=None):
    assert preds.shape == labels.shape
    n_elements = preds.size  # torch.mean divides by the total element count

    p_flat = preds.reshape(-1)
    l_flat = labels.reshape(-1)

    # Pad only the tiny (<128-element) ragged lane tail; zero pads contribute
    # (0-0)^2 = 0 and the divisor uses the original count.
    rem = n_elements % LANES
    if rem:
        pad = LANES - rem
        p_flat = jnp.pad(p_flat, (0, pad))
        l_flat = jnp.pad(l_flat, (0, pad))

    rows = p_flat.size // LANES

    if tile_rows is None:
        tile_rows = _default_tile_rows()
    tile_rows = int(tile_rows)
    if rows <= tile_rows:
        tile_rows = rows   # full-array block (always a legal block shape)

    num_blocks = pl.cdiv(rows, tile_rows)

    if num_splits is None:
        num_splits = NUM_CORE_SPLITS if num_blocks >= NUM_CORE_SPLITS else 1
    num_splits = max(1, min(int(num_splits), num_blocks))
    blocks_per_split = pl.cdiv(num_blocks, num_splits)
    padded_blocks = num_splits * blocks_per_split

    partial_last = (rows % tile_rows) != 0
    mask_needed = partial_last or (padded_blocks != num_blocks)
    first_masked_block = num_blocks - 1 if partial_last else num_blocks

    # Accumulator: one vreg tall when the tile folds cleanly, else tile-shaped
    # (only possible for tiny single-block inputs with rows % 8 != 0).
    acc_rows = ACC_ROWS if (tile_rows % ACC_ROWS) == 0 else tile_rows

    p2d = p_flat.reshape(rows, LANES)
    l2d = l_flat.reshape(rows, LANES)

    if padded_blocks != num_blocks:
        # Clamp duplicated trailing blocks to the last real block; their rows
        # are fully zeroed by the in-kernel row mask.
        def in_index_map(c, i):
            return (jnp.minimum(c * blocks_per_split + i, num_blocks - 1), 0)
    else:
        def in_index_map(c, i):
            return (c * blocks_per_split + i, 0)

    kernel = functools.partial(
        _rmse_kernel,
        blocks_per_split=blocks_per_split,
        tile_rows=tile_rows,
        total_rows=rows,
        first_masked_block=first_masked_block,
        mask_needed=mask_needed,
    )

    # Scoped-VMEM budget: 2 pipeline buffers per input block + accumulator +
    # partial-sum output + headroom.  Stays well under v7x's 64 MiB physical.
    in_block_bytes = tile_rows * LANES * (p2d.dtype.itemsize + l2d.dtype.itemsize)
    acc_bytes = acc_rows * LANES * 4
    vmem_limit = int(2 * in_block_bytes + 4 * acc_bytes + (2 << 20))
    vmem_limit = max(vmem_limit, 16 << 20)
    vmem_limit = min(vmem_limit, 48 << 20)

    partials = pl.pallas_call(
        kernel,
        out_shape=jax.ShapeDtypeStruct((num_splits, acc_rows, LANES), jnp.float32),
        grid_spec=pltpu.PrefetchScalarGridSpec(
            num_scalar_prefetch=0,
            grid=(num_splits, blocks_per_split),
            in_specs=[
                pl.BlockSpec((tile_rows, LANES), in_index_map),
                pl.BlockSpec((tile_rows, LANES), in_index_map),
            ],
            out_specs=pl.BlockSpec((1, acc_rows, LANES), lambda c, i: (c, 0, 0)),
            scratch_shapes=[pltpu.VMEM((acc_rows, LANES), jnp.float32)],
        ),
        compiler_params=pltpu.CompilerParams(
            # Core axis parallel (2x on v7x megacore), reduction axis sequential.
            dimension_semantics=("parallel", "arbitrary"),
            vmem_limit_bytes=vmem_limit,
        ),
    )(p2d, l2d)

    # Tiny cross-core / cross-lane reduction + sqrt in plain JAX.
    return jnp.sqrt(jnp.sum(partials) / jnp.float32(n_elements))


def rmse_ref(preds, labels):
    loss = jnp.square(preds.astype(jnp.float32) - labels.astype(jnp.float32))
    loss = jnp.where(jnp.isnan(loss), jnp.zeros_like(loss), loss)
    return jnp.sqrt(jnp.mean(loss))


if __name__ == "__main__":
    key = jax.random.PRNGKey(0)
    k1, k2, k3, k4 = jax.random.split(key, 4)

    # Small (N, C, H, W) shape consistent with the metric's usual inputs.
    shape = (2, 4, 16, 16)
    preds = jax.random.normal(k1, shape, dtype=jnp.float32)
    labels = jax.random.normal(k2, shape, dtype=jnp.float32)
    # sprinkle NaNs in labels to exercise the isnan -> 0 path
    labels = labels.at[0, 1, 3, 5].set(jnp.nan)
    labels = labels.at[1, 2, 7, 9].set(jnp.nan)

    out = jax.block_until_ready(rmse_pallas(preds, labels))
    ref = rmse_ref(preds, labels)
    assert jnp.allclose(out, ref, rtol=1e-6, atol=1e-6), (out, ref)

    # Ragged size: 143,655 elements -> 1123 rows of 128 (needs lane-tail pad).
    shape2 = (3, 5, 61, 157)
    preds2 = jax.random.normal(k3, shape2, dtype=jnp.float32)
    labels2 = jax.random.normal(k4, shape2, dtype=jnp.float32)
    labels2 = labels2.at[1, 2, 30, 70].set(jnp.nan)
    ref2 = rmse_ref(preds2, labels2)

    # Default (device-tuned) config: single big block on this small input.
    out2 = jax.block_until_ready(rmse_pallas(preds2, labels2))
    assert jnp.allclose(out2, ref2, rtol=1e-5, atol=1e-6), (out2, ref2)

    # Forced small tiles: multi-block grid, 2-way core split, partial-last-block
    # row mask, and the (8,128) accumulator fold.
    out3 = jax.block_until_ready(
        rmse_pallas(preds2, labels2, tile_rows=64, num_splits=2))
    assert jnp.allclose(out3, ref2, rtol=1e-5, atol=1e-6), (out3, ref2)

    # Odd block count: exercises the clamped index_map + fully-masked blocks.
    out4 = jax.block_until_ready(
        rmse_pallas(preds2, labels2, tile_rows=128, num_splits=2))
    assert jnp.allclose(out4, ref2, rtol=1e-5, atol=1e-6), (out4, ref2)

    print("KERNEL_OK")
</pallas_src>

<mosaic_0001>
module attributes {stable_mosaic.version = 11 : i64} {
  func.func @_rmse_kernel(%arg0: i32, %arg1: i32, %arg2: memref<16x128xf32, #tpu.memory_space<vmem>>, %arg3: memref<16x128xf32, #tpu.memory_space<vmem>>, %arg4: memref<1x8x128xf32, #tpu.memory_space<vmem>>, %arg5: memref<8x128xf32, #tpu.memory_space<vmem>>) attributes {dimension_semantics = [#tpu.dimension_semantics<parallel>, #tpu.dimension_semantics<arbitrary>], iteration_bounds = array<i64: 1, 1>, scalar_prefetch = 0 : i64, scratch_operands = 1 : i64, tpu.core_type = #tpu.core_type<tc>, window_params = [{transform_indices = @transform_0, window_bounds = array<i64: 16, 128>}, {transform_indices = @transform_1, window_bounds = array<i64: 16, 128>}, {transform_indices = @transform_2, window_bounds = array<i64: 1, 8, 128>}]} {
    %c0_i32 = arith.constant 0 : i32
    %0 = arith.cmpi eq, %arg1, %c0_i32 : i32
    %1 = arith.extui %0 : i1 to i32
    %c0_i32_0 = arith.constant 0 : i32
    %2 = arith.cmpi ne, %1, %c0_i32_0 : i32
    scf.if %2 {
      %cst_11 = arith.constant 0.000000e+00 : f32
      %18 = vector.broadcast %cst_11 : f32 to vector<8x128xf32>
      %c0_12 = arith.constant 0 : index
      %c0_13 = arith.constant 0 : index
      %19 = vector.load %arg5[%c0_12, %c0_13] : memref<8x128xf32, #tpu.memory_space<vmem>>, vector<8x128xf32>
      tpu.vector_store %arg5[%c0_12, %c0_13], %18 {strides = array<i32>} : memref<8x128xf32, #tpu.memory_space<vmem>>, vector<8x128xf32>,
    } else {
    }
    %c0 = arith.constant 0 : index
    %c0_1 = arith.constant 0 : index
    %3 = vector.load %arg2[%c0, %c0_1] : memref<16x128xf32, #tpu.memory_space<vmem>>, vector<16x128xf32>
    %c0_2 = arith.constant 0 : index
    %c0_3 = arith.constant 0 : index
    %4 = vector.load %arg3[%c0_2, %c0_3] : memref<16x128xf32, #tpu.memory_space<vmem>>, vector<16x128xf32>
    %5 = arith.subf %3, %4 : vector<16x128xf32>
    %6 = arith.mulf %5, %5 : vector<16x128xf32>
    %7 = arith.cmpf one, %6, %6 : vector<16x128xf32>
    %cst = arith.constant 0.000000e+00 : f32
    %8 = vector.broadcast %cst : f32 to vector<16x128xf32>
    %9 = arith.select %7, %8, %6 : vector<16x128xi1>, vector<16x128xf32>
    %c0_4 = arith.constant 0 : index
    %c0_5 = arith.constant 0 : index
    %10 = vector.load %arg5[%c0_4, %c0_5] : memref<8x128xf32, #tpu.memory_space<vmem>>, vector<8x128xf32>
    %11 = vector.shape_cast %9 : vector<16x128xf32> to vector<2x8x128xf32>
    %cst_6 = arith.constant dense<0.000000e+00> : vector<8x128xf32>
    %12 = vector.multi_reduction <add>, %11, %cst_6 [0] : vector<2x8x128xf32> to vector<8x128xf32>
    %13 = arith.addf %10, %12 : vector<8x128xf32>
    %c0_7 = arith.constant 0 : index
    %c0_8 = arith.constant 0 : index
    %14 = vector.load %arg5[%c0_7, %c0_8] : memref<8x128xf32, #tpu.memory_space<vmem>>, vector<8x128xf32>
    tpu.vector_store %arg5[%c0_7, %c0_8], %13 {strides = array<i32>} : memref<8x128xf32, #tpu.memory_space<vmem>>, vector<8x128xf32>,
    %c0_i32_9 = arith.constant 0 : i32
    %15 = arith.cmpi eq, %arg1, %c0_i32_9 : i32
    %16 = arith.extui %15 : i1 to i32
    %c0_i32_10 = arith.constant 0 : i32
    %17 = arith.cmpi ne, %16, %c0_i32_10 : i32
    scf.if %17 {
      %c0_11 = arith.constant 0 : index
      %c0_12 = arith.constant 0 : index
      %18 = vector.load %arg5[%c0_11, %c0_12] : memref<8x128xf32, #tpu.memory_space<vmem>>, vector<8x128xf32>
      %c0_13 = arith.constant 0 : index
      %c0_14 = arith.constant 0 : index
      %c0_15 = arith.constant 0 : index
      %19 = vector.load %arg4[%c0_13, %c0_14, %c0_15] : memref<1x8x128xf32, #tpu.memory_space<vmem>>, vector<1x8x128xf32>
      %20 = vector.shape_cast %19 : vector<1x8x128xf32> to vector<8x128xf32>
      %21 = vector.shape_cast %18 : vector<8x128xf32> to vector<1x8x128xf32>
      tpu.vector_store %arg4[%c0_13, %c0_14, %c0_15], %21 {strides = array<i32>} : memref<1x8x128xf32, #tpu.memory_space<vmem>>, vector<1x8x128xf32>,
    } else {
    }
    return
  }
  func.func @transform_0(%arg0: i32, %arg1: i32) -> (i32, i32) {
    %c1_i32 = arith.constant 1 : i32
    %0 = arith.muli %arg0, %c1_i32 : i32
    %1 = arith.addi %0, %arg1 : i32
    %c0_i32 = arith.constant 0 : i32
    %c0_i32_0 = arith.constant 0 : i32
    return %1, %c0_i32 : i32, i32
  }
  func.func @transform_1(%arg0: i32, %arg1: i32) -> (i32, i32) {
    %c1_i32 = arith.constant 1 : i32
    %0 = arith.muli %arg0, %c1_i32 : i32
    %1 = arith.addi %0, %arg1 : i32
    %c0_i32 = arith.constant 0 : i32
    %c0_i32_0 = arith.constant 0 : i32
    return %1, %c0_i32 : i32, i32
  }
  func.func @transform_2(%arg0: i32, %arg1: i32) -> (i32, i32, i32) {
    %c0_i32 = arith.constant 0 : i32
    %c0_i32_0 = arith.constant 0 : i32
    %c0_i32_1 = arith.constant 0 : i32
    return %arg0, %c0_i32, %c0_i32_0 : i32, i32, i32
  }
}

</mosaic_0001>

<llo_original>
// kernel: tpu_custom_call.1
$region0: #{tpu_custom_call.1}
  #allocation0 [shape = 'u32[]', space=smem, size = 0x4, offset = 0x4, fixed_abs, tag = 'smem constant byte address 0x4 - core index']
  #allocation1 [shape = 'u32[144,128]{1,0:T(1,128)}', space=vmem, size = 0x12000, scoped, tag = 'internal scratch']
  #allocation2 [shape = 'f32[8,128]{1,0:T(8,128)}', space=vmem, size = 0x1000, scoped, tag = 'scratch operand']
  %s0 = inlined_call_operand.hbm [shape: f32[16,128], index: 0, kind: input, shape index: {}]
  %s1 = inlined_call_operand.hbm [shape: f32[16,128], index: 1, kind: input, shape index: {}]
  %s2 = inlined_call_operand.hbm [shape: f32[1,8,128], index: 2, kind: output, shape index: {}]
  %s3 = sld [smem:[#allocation0]]
  $region34: #{tpu_custom_call.1} parent=0
    _
  %s5 = ssub.s32 1, %s3
  %s6 = scalar_select 0, %s5, %s3
  $region1: #{tpu_custom_call.1} parent=0
    #allocation3 [shape = 'u8[8192]{0}', space=vmem, size = 0x2000, scoped, tag = 'input window, operand 0, single buffered']
    #allocation4 [shape = 's32[1]{0}', space=sflag, size = 0x4, scoped, tag = 'scoped memory for tpu_custom_call.1']
    #allocation5 [shape = 's32[1]{0}', space=sflag, size = 0x4, scoped, tag = 'scoped memory for tpu_custom_call.1']
    #allocation6 [shape = 'u8[8192]{0}', space=vmem, size = 0x2000, scoped, tag = 'input window, operand 1, single buffered']
    #allocation7 [shape = 's32[1]{0}', space=sflag, size = 0x4, scoped, tag = 'scoped memory for tpu_custom_call.1']
    #allocation8 [shape = 'u8[4096]{0}', space=vmem, size = 0x1000, scoped, tag = 'output window, operand 0, single buffered']
    %7 = vsyncpa [#allocation4], 0
    %8 = vsyncpa [#allocation7], 0
    %9 = vsyncpa [#allocation5], 0
    // Predicated region
    $region2: #{tpu_custom_call.1} parent=1 // pred_check
      _
    $region3: #{tpu_custom_call.1} parent=1 // pred_check_branch
      %11 = sbr.rel (0) target = $region5
    $region4: #{tpu_custom_call.1} parent=1 // pred_region
      %s12 = sadd.s32 0, 0
      %s13 = smul.u32 2, %s12
      %s15 = ssub.s32 256, 256
      %16 = vsyncadd [#allocation4], %s15
      %s17 = smul.addr %s13, 128
      %s18 = scalar_lea.hbm %s0, %s17
      %s19 = sshll.u32 [#allocation3], 4
      %s20 = int_to_ptr.vmem [resolvable:$true] %s19
      %25 = dma.hbm_to_vmem [thread:$0]  %s18, 256, %s20, [#allocation4], 128, 128, 8
    $region5: #{tpu_custom_call.1} parent=1 // pred_fallthru
      _
    // Predicated region
    $region6: #{tpu_custom_call.1} parent=1 // pred_check
      _
    $region7: #{tpu_custom_call.1} parent=1 // pred_check_branch
      %27 = sbr.rel (0) target = $region9
    $region8: #{tpu_custom_call.1} parent=1 // pred_region
      %s28 = sadd.s32 0, 0
      %s29 = smul.u32 2, %s28
      %s31 = ssub.s32 256, 256
      %32 = vsyncadd [#allocation7], %s31
      %s33 = smul.addr %s29, 128
      %s34 = scalar_lea.hbm %s1, %s33
      %s35 = sshll.u32 [#allocation6], 4
      %s36 = int_to_ptr.vmem [resolvable:$true] %s35
      %41 = dma.hbm_to_vmem [thread:$0]  %s34, 256, %s36, [#allocation7], 128, 128, 8
    $region9: #{tpu_custom_call.1} parent=1 // pred_fallthru
      _
    // Predicated region
    $region10: #{tpu_custom_call.1} parent=1 // pred_check
      _
    $region11: #{tpu_custom_call.1} parent=1 // pred_check_branch
      %43 = sbr.rel (0) target = $region13
    $region12: #{tpu_custom_call.1} parent=1 // pred_region
      %44 = dma.done [#allocation4], 256
    $region13: #{tpu_custom_call.1} parent=1 // pred_fallthru
      _
    // Predicated region
    $region14: #{tpu_custom_call.1} parent=1 // pred_check
      _
    $region15: #{tpu_custom_call.1} parent=1 // pred_check_branch
      %46 = sbr.rel (0) target = $region17
    $region16: #{tpu_custom_call.1} parent=1 // pred_region
      %47 = dma.done [#allocation7], 256
    $region17: #{tpu_custom_call.1} parent=1 // pred_fallthru
      _
    %s48 = sadd.s32 0, 0
    %s49 = smul.u32 2, %s48
    %s50 = sadd.s32 0, 0
    %s51 = smul.u32 2, %s50
    %p52 = scmp.eq.s32.totalorder 0, 0
    // Predicated region
    $region18: #{tpu_custom_call.1} parent=1 // pred_check
      %p53 = pneg %p52
    $region19: #{tpu_custom_call.1} parent=1 // pred_check_branch
      %55 = sbr.rel (%p53) target = $region21
    $region20: #{tpu_custom_call.1} parent=1 // pred_region
      %56 = vst [vmem:[#allocation2] sm:$0xff] 0.0
    $region21: #{tpu_custom_call.1} parent=1 // pred_fallthru
      _
    %v57 = vld [vmem:[#allocation3] sm:$0xff]
    %v58 = vld [vmem:[#allocation3 + $0x8] sm:$0xff]
    %v59 = vld [vmem:[#allocation6] sm:$0xff]
    %v60 = vld [vmem:[#allocation6 + $0x8] sm:$0xff]
    %v61 = vsub.f32 %v57, %v59
    %v62 = vsub.f32 %v58, %v60
    %v63 = vmul.f32 %v61, %v61
    %v64 = vmul.f32 %v62, %v62
    %vm65 = vcmp.ne.f32.partialorder %v63, %v63
    %vm66 = vcmp.ne.f32.partialorder %v64, %v64
    %v67 = vsel %vm65, 0.0, %v63
    %v68 = vsel %vm66, 0.0, %v64
    %v69 = vld [vmem:[#allocation2] sm:$0xff]
    %v70 = vadd.f32 %v67, %v68
    %v71 = vadd.f32 %v69, %v70
    %72 = vst [vmem:[#allocation2] sm:$0xff] %v71
    // Predicated region
    $region22: #{tpu_custom_call.1} parent=1 // pred_check
      %p73 = pneg %p52
    $region23: #{tpu_custom_call.1} parent=1 // pred_check_branch
      %75 = sbr.rel (%p73) target = $region25
    $region24: #{tpu_custom_call.1} parent=1 // pred_region
      %v76 = vld [vmem:[#allocation2] sm:$0xff]
      %77 = vst [vmem:[#allocation8] sm:$0xff] %v76
    $region25: #{tpu_custom_call.1} parent=1 // pred_fallthru
      _
    // Predicated region
    $region26: #{tpu_custom_call.1} parent=1 // pred_check
      _
    $region27: #{tpu_custom_call.1} parent=1 // pred_check_branch
      %79 = sbr.rel (0) target = $region29
    $region28: #{tpu_custom_call.1} parent=1 // pred_region
      %s81 = ssub.s32 128, 128
      %82 = vsyncadd [#allocation5], %s81
      %s84 = sshll.u32 [#allocation8], 4
      %s85 = int_to_ptr.vmem [resolvable:$true] %s84
      %87 = dma.vmem_to_hbm [thread:$0]  %s85, 128, %s2, [#allocation5]
    $region29: #{tpu_custom_call.1} parent=1 // pred_fallthru
      _
    // Predicated region
    $region30: #{tpu_custom_call.1} parent=1 // pred_check
      _
    $region31: #{tpu_custom_call.1} parent=1 // pred_check_branch
      %89 = sbr.rel (0) target = $region33
    $region32: #{tpu_custom_call.1} parent=1 // pred_region
      %90 = dma.done [#allocation5], 128
    $region33: #{tpu_custom_call.1} parent=1 // pred_fallthru
      _
    %91 = vsyncpa [#allocation4], 1
    %92 = vsyncpa [#allocation7], 1
    %93 = vsyncpa [#allocation5], 1

</llo_original>
